<compile_context>
chip_gen: v5e
topology: v5e:2x2
jax: 0.10.0
libtpu: 0.0.40
codegen_flags: <defaults>
</compile_context>

<pallas_src>
import jax
import jax.numpy as jnp
from jax.experimental import pallas as pl
from jax.experimental.pallas import tpu as pltpu


# ----------------------------------------------------------------------------
# Kernels
# ----------------------------------------------------------------------------
def _attn_kernel_packed(q_ref, k_ref, v_ref, o_ref):
    """Lane-dense path for small S: pack B_TILE heads into one flattened
    (B_TILE*S, D) slab, do a single block-diagonal-masked softmax-attention."""
    bt, S, D = q_ref.shape
    n = bt * S

    # Collapse of the leading dims only (last dim unchanged, S % 8 == 0):
    # layout-trivial, no relayout.
    q = q_ref[...].reshape(n, D)
    k = k_ref[...].reshape(n, D)
    v = v_ref[...].reshape(n, D)

    # One lane-dense MXU matmul for all bt heads; contract on D for both
    # operands (no explicit K transpose materialized).  f32 accumulation.
    scores = jnp.einsum("qd,kd->qk", q, k,
                        preferred_element_type=jnp.float32)      # (n, n) f32

    # x1 / rsqrt(head_size) == x1 * sqrt(D), applied to the f32 scores
    # post-MXU (matches the module's op order; no pre-MXU quantization).
    scores = scores * jnp.sqrt(jnp.float32(D))

    # Block-diagonal mask (row head == col head), built division-free:
    #   start[i, :] = (i // S) * S  via a 3-D iota over the head axis.
    start = jax.lax.broadcasted_iota(jnp.int32, (bt, S, n), 0).reshape(n, n) * S
    col = jax.lax.broadcasted_iota(jnp.int32, (n, n), 1)
    mask = (col >= start) & (col < start + S)
    scores = jnp.where(mask, scores, jnp.float32(-1e30))

    # Numerically stable softmax along the (now 128-lane-wide) key axis.
    m = jnp.max(scores, axis=-1, keepdims=True)
    e = jnp.exp(scores - m)
    p = e * (1.0 / jnp.sum(e, axis=-1, keepdims=True))

    # dropout(p=self.dropout) -> identity at inference (see TODO above).

    out = jnp.einsum("qk,kd->qd", p.astype(v.dtype), v,
                     preferred_element_type=jnp.float32)          # (n, D) f32
    o_ref[...] = out.reshape(bt, S, D).astype(o_ref.dtype)


def _attn_kernel_batched(q_ref, k_ref, v_ref, o_ref):
    """General path (S >= 128 or S not a multiple of 8): per-head batched
    matmuls over a (B_TILE, S, D) block."""
    D = q_ref.shape[-1]

    scores = jnp.einsum("bqd,bkd->bqk", q_ref[...], k_ref[...],
                        preferred_element_type=jnp.float32)       # (bt,S,S) f32
    scores = scores * jnp.sqrt(jnp.float32(D))

    m = jnp.max(scores, axis=-1, keepdims=True)
    e = jnp.exp(scores - m)
    p = e * (1.0 / jnp.sum(e, axis=-1, keepdims=True))

    # dropout -> identity (see TODO above).
    out = jnp.einsum("bqk,bkd->bqd", p.astype(v_ref.dtype), v_ref[...],
                     preferred_element_type=jnp.float32)
    o_ref[...] = out.astype(o_ref.dtype)


# ----------------------------------------------------------------------------
# Generation-aware sizing
# ----------------------------------------------------------------------------
def _tpu_hw_info():
    """(physical VMEM bytes, TensorCores per chip) with safe fallbacks."""
    vmem_bytes = 64 * 1024 * 1024   # conservative default (v7x-sized)
    num_cores = 1
    try:
        info = pltpu.get_tpu_info()
        vmem_bytes = int(getattr(info, "vmem_capacity_bytes", vmem_bytes))
        num_cores = int(getattr(info, "num_cores",
                                getattr(info, "tensorcores_per_chip", num_cores)))
    except Exception:
        pass
    try:
        kind = jax.devices()[0].device_kind.lower()
        if "v7" in kind:
            num_cores = max(num_cores, 2)
    except Exception:
        pass
    return vmem_bytes, num_cores


def _pick_packed_tile(B, S, D, itemsize, budget, min_steps):
    """Head-pack size for the lane-dense kernel: smallest divisor of B whose
    flattened (t*S, t*S) scores slab is >= 128 lanes wide, backed off if it
    overflows the VMEM budget or (multi-TC chips) leaves < min_steps steps."""
    divs = sorted(t for t in range(1, B + 1) if B % t == 0)

    def footprint(t):
        n = t * S
        io = 2 * 4 * t * S * D * itemsize      # double-buffered q, k, v, out
        tmp = 5 * n * n * 4 + t * S * D * 4    # scores/exp/prob/mask (f32) + f32 out
        return io + tmp

    dense = [t for t in divs if t * S >= 128]
    t = dense[0] if dense else divs[-1]
    while t > 1 and (footprint(t) > budget or B // t < min_steps):
        t = max(d for d in divs if d < t)
    return t


def _pick_batched_tile(B, S, D, itemsize, budget, min_steps):
    """Largest head-tile (divisor of B) whose full footprint fits the budget.
    Single grid step is allowed on 1-TC chips (no forced >=2 steps)."""
    divs = sorted(t for t in range(1, B + 1) if B % t == 0)

    def footprint(t):
        io = 2 * 4 * t * S * D * itemsize
        tmp = 3 * t * S * S * 4 + t * S * D * 4
        return io + tmp

    fitting = [d for d in divs if footprint(d) <= budget]
    t = max(fitting) if fitting else 1
    while t > 1 and B // t < min_steps:
        t = max(d for d in divs if d < t)
    return t


# ----------------------------------------------------------------------------
# Wrapper
# ----------------------------------------------------------------------------
def sdpa_pallas(query, key, value, batch_size):
    """query/key/value: (B, S, D).  Returns (batch_size, -1, S) to mirror
    torch's `.reshape(batch_size, -1, v3.shape[-1])`."""
    B, S, D = query.shape
    assert key.shape == (B, S, D) and value.shape == (B, S, D)

    vmem_phys, num_cores = _tpu_hw_info()
    vmem_limit = min(vmem_phys * 3 // 4, 96 * 1024 * 1024)
    budget = min(int(vmem_phys * 0.45), 64 * 1024 * 1024)
    min_steps = 2 if num_cores >= 2 else 1   # v7x: 2 TCs; v5e/v6e: serial grid

    itemsize = jnp.dtype(query.dtype).itemsize
    use_packed = (S < 128) and (S % 8 == 0)
    if use_packed:
        b_tile = _pick_packed_tile(B, S, D, itemsize, budget, min_steps)
        kernel = _attn_kernel_packed
    else:
        # TODO(synk): very large S would want a flash-style key-axis grid with
        # online softmax instead of only shrinking b_tile.
        b_tile = _pick_batched_tile(B, S, D, itemsize, budget, min_steps)
        kernel = _attn_kernel_batched

    grid = (B // b_tile,)
    block = pl.BlockSpec((b_tile, S, D), lambda b: (b, 0, 0))

    out = pl.pallas_call(
        kernel,
        out_shape=jax.ShapeDtypeStruct((B, S, D), query.dtype),
        grid_spec=pltpu.PrefetchScalarGridSpec(
            num_scalar_prefetch=0,
            grid=grid,
            in_specs=[block, block, block],
            out_specs=block,
        ),
        compiler_params=pltpu.CompilerParams(
            dimension_semantics=("parallel",),
            vmem_limit_bytes=int(vmem_limit),
        ),
    )(query, key, value)

    # Glue reshape outside the kernel, faithful to the module (v3.shape[-1]==S).
    return out.reshape(batch_size, -1, S)


class ModelPallas:
    """Mirror of the PyTorch Model (its Parameters are unused in forward)."""

    def __init__(self, num_heads, query_len, hidden_size, dropout):
        self.num_heads = num_heads
        self.query = jnp.zeros((num_heads, query_len, hidden_size), jnp.float32)
        self.key = jnp.zeros((num_heads, query_len, hidden_size), jnp.float32)
        self.value = jnp.zeros((num_heads, query_len, hidden_size), jnp.float32)
        self.dropout = dropout

    def __call__(self, query, key, value, batch_size):
        return sdpa_pallas(query, key, value, batch_size)


def _reference(query, key, value, batch_size):
    d = query.shape[-1]
    s = key.shape[-2]
    scores = jnp.einsum("bqd,bkd->bqk", query, key,
                        precision=jax.lax.Precision.HIGHEST)
    scores = scores * jnp.sqrt(jnp.float32(d))   # x1 / rsqrt(d) == x1 * sqrt(d)
    p = jax.nn.softmax(scores, axis=-1)
    out = jnp.einsum("bqk,bkd->bqd", p, value,
                     precision=jax.lax.Precision.HIGHEST)
    return out.reshape(batch_size, -1, s)


if __name__ == "__main__":
    # Small shapes consistent with the module's (64, 16, 128) inputs.
    B, S, D = 8, 16, 128
    batch_size = 2

    k0 = jax.random.PRNGKey(0)
    kq, kk, kv = jax.random.split(k0, 3)
    # Moderate Q/K magnitudes keep the module's x*sqrt(D) pre-softmax scaling
    # numerically well conditioned so the fp32 comparison below is meaningful.
    query = 0.1 * jax.random.normal(kq, (B, S, D), dtype=jnp.float32)
    key = 0.1 * jax.random.normal(kk, (B, S, D), dtype=jnp.float32)
    value = jax.random.normal(kv, (B, S, D), dtype=jnp.float32)

    model = ModelPallas(num_heads=1, query_len=1, hidden_size=1, dropout=1)
    out = jax.block_until_ready(model(query, key, value, batch_size))

    ref = _reference(query, key, value, batch_size)
    assert out.shape == ref.shape, (out.shape, ref.shape)
    max_err = float(jnp.max(jnp.abs(out - ref)))
    assert jnp.allclose(out, ref, atol=2e-2, rtol=2e-2), (
        "mismatch vs reference, max abs err = %g" % max_err)

    print("KERNEL_OK")
</pallas_src>

<mosaic_0001>
module attributes {stable_mosaic.version = 11 : i64} {
  func.func @_attn_kernel_packed(%arg0: i32, %arg1: memref<8x16x128xf32, #tpu.memory_space<vmem>>, %arg2: memref<8x16x128xf32, #tpu.memory_space<vmem>>, %arg3: memref<8x16x128xf32, #tpu.memory_space<vmem>>, %arg4: memref<8x16x128xf32, #tpu.memory_space<vmem>>) attributes {dimension_semantics = [#tpu.dimension_semantics<parallel>], iteration_bounds = array<i64: 1>, scalar_prefetch = 0 : i64, scratch_operands = 0 : i64, tpu.core_type = #tpu.core_type<tc>, window_params = [{transform_indices = @transform_0, window_bounds = array<i64: 8, 16, 128>}, {transform_indices = @transform_1, window_bounds = array<i64: 8, 16, 128>}, {transform_indices = @transform_2, window_bounds = array<i64: 8, 16, 128>}, {transform_indices = @transform_3, window_bounds = array<i64: 8, 16, 128>}]} {
    %c0 = arith.constant 0 : index
    %c0_0 = arith.constant 0 : index
    %c0_1 = arith.constant 0 : index
    %0 = vector.load %arg1[%c0, %c0_0, %c0_1] : memref<8x16x128xf32, #tpu.memory_space<vmem>>, vector<8x16x128xf32>
    %1 = vector.shape_cast %0 : vector<8x16x128xf32> to vector<128x128xf32>
    %c0_2 = arith.constant 0 : index
    %c0_3 = arith.constant 0 : index
    %c0_4 = arith.constant 0 : index
    %2 = vector.load %arg2[%c0_2, %c0_3, %c0_4] : memref<8x16x128xf32, #tpu.memory_space<vmem>>, vector<8x16x128xf32>
    %3 = vector.shape_cast %2 : vector<8x16x128xf32> to vector<128x128xf32>
    %c0_5 = arith.constant 0 : index
    %c0_6 = arith.constant 0 : index
    %c0_7 = arith.constant 0 : index
    %4 = vector.load %arg3[%c0_5, %c0_6, %c0_7] : memref<8x16x128xf32, #tpu.memory_space<vmem>>, vector<8x16x128xf32>
    %5 = vector.shape_cast %4 : vector<8x16x128xf32> to vector<128x128xf32>
    "tpu.trace_start"() <{level = 10 : i32, message = "qd,kd->qk"}> : () -> ()
    %cst = arith.constant dense<0.000000e+00> : vector<128x128xf32>
    %6 = tpu.matmul %1, %3, %cst {dimension_numbers = #tpu.dot_dimension_numbers<[1], [1], [0], [0], [0, 0, 1, 0], [], []>} : vector<128x128xf32>, vector<128x128xf32>, vector<128x128xf32> -> vector<128x128xf32>
    %cst_8 = arith.constant 1.280000e+02 : f32
    "tpu.trace_stop"() : () -> ()
    %7 = math.sqrt %cst_8 : f32
    %8 = vector.broadcast %7 : f32 to vector<128x128xf32>
    %9 = arith.mulf %6, %8 : vector<128x128xf32>
    %10 = tpu.iota {dimensions = array<i32: 0>} : vector<8x16x128xi32>
    %11 = vector.shape_cast %10 : vector<8x16x128xi32> to vector<128x128xi32>
    %c16_i32 = arith.constant 16 : i32
    %12 = vector.broadcast %c16_i32 : i32 to vector<128x128xi32>
    %13 = arith.muli %11, %12 : vector<128x128xi32>
    %14 = tpu.iota {dimensions = array<i32: 1>} : vector<128x128xi32>
    %15 = arith.cmpi sge, %14, %13 : vector<128x128xi32>
    %c16_i32_9 = arith.constant 16 : i32
    %16 = vector.broadcast %c16_i32_9 : i32 to vector<128x128xi32>
    %17 = arith.addi %13, %16 : vector<128x128xi32>
    %18 = arith.cmpi slt, %14, %17 : vector<128x128xi32>
    %19 = arith.andi %15, %18 : vector<128x128xi1>
    %cst_10 = arith.constant -1.000000e+30 : f32
    %20 = vector.broadcast %cst_10 : f32 to vector<128x128xf32>
    %21 = arith.select %19, %9, %20 : vector<128x128xi1>, vector<128x128xf32>
    %cst_11 = arith.constant dense<0xFF800000> : vector<128xf32>
    %22 = vector.multi_reduction <maximumf>, %21, %cst_11 [1] : vector<128x128xf32> to vector<128xf32>
    %23 = vector.shape_cast %22 : vector<128xf32> to vector<128x1xf32>
    %24 = vector.broadcast %23 : vector<128x1xf32> to vector<128x128xf32>
    %25 = arith.subf %21, %24 : vector<128x128xf32>
    %26 = math.exp %25 : vector<128x128xf32>
    %cst_12 = arith.constant dense<0.000000e+00> : vector<128xf32>
    %27 = vector.multi_reduction <add>, %26, %cst_12 [1] : vector<128x128xf32> to vector<128xf32>
    %28 = vector.shape_cast %27 : vector<128xf32> to vector<128x1xf32>
    %cst_13 = arith.constant 1.000000e+00 : f32
    %29 = vector.broadcast %cst_13 : f32 to vector<128x1xf32>
    %30 = arith.divf %29, %28 : vector<128x1xf32>
    %31 = vector.broadcast %30 : vector<128x1xf32> to vector<128x128xf32>
    %32 = arith.mulf %26, %31 : vector<128x128xf32>
    "tpu.trace_start"() <{level = 10 : i32, message = "qk,kd->qd"}> : () -> ()
    %cst_14 = arith.constant dense<0.000000e+00> : vector<128x128xf32>
    %33 = tpu.matmul %32, %5, %cst_14 {dimension_numbers = #tpu.dot_dimension_numbers<[1], [0], [0], [1], [0, 0, 1, 1], [], []>} : vector<128x128xf32>, vector<128x128xf32>, vector<128x128xf32> -> vector<128x128xf32>
    "tpu.trace_stop"() : () -> ()
    %34 = vector.shape_cast %33 : vector<128x128xf32> to vector<8x16x128xf32>
    %c0_15 = arith.constant 0 : index
    %c0_16 = arith.constant 0 : index
    %c0_17 = arith.constant 0 : index
    %35 = vector.load %arg4[%c0_15, %c0_16, %c0_17] : memref<8x16x128xf32, #tpu.memory_space<vmem>>, vector<8x16x128xf32>
    tpu.vector_store %arg4[%c0_15, %c0_16, %c0_17], %34 {strides = array<i32>} : memref<8x16x128xf32, #tpu.memory_space<vmem>>, vector<8x16x128xf32>,
    return
  }
  func.func @transform_0(%arg0: i32) -> (i32, i32, i32) {
    %c0_i32 = arith.constant 0 : i32
    %c0_i32_0 = arith.constant 0 : i32
    %c0_i32_1 = arith.constant 0 : i32
    return %arg0, %c0_i32, %c0_i32_0 : i32, i32, i32
  }
  func.func @transform_1(%arg0: i32) -> (i32, i32, i32) {
    %c0_i32 = arith.constant 0 : i32
    %c0_i32_0 = arith.constant 0 : i32
    %c0_i32_1 = arith.constant 0 : i32
    return %arg0, %c0_i32, %c0_i32_0 : i32, i32, i32
  }
  func.func @transform_2(%arg0: i32) -> (i32, i32, i32) {
    %c0_i32 = arith.constant 0 : i32
    %c0_i32_0 = arith.constant 0 : i32
    %c0_i32_1 = arith.constant 0 : i32
    return %arg0, %c0_i32, %c0_i32_0 : i32, i32, i32
  }
  func.func @transform_3(%arg0: i32) -> (i32, i32, i32) {
    %c0_i32 = arith.constant 0 : i32
    %c0_i32_0 = arith.constant 0 : i32
    %c0_i32_1 = arith.constant 0 : i32
    return %arg0, %c0_i32, %c0_i32_0 : i32, i32, i32
  }
}

</mosaic_0001>

<llo_original>
// kernel: tpu_custom_call.1
$region0: #{tpu_custom_call.1}
  #allocation0 [shape = 'u32[]', space=smem, size = 0x4, offset = 0x4, fixed_abs, tag = 'smem constant byte address 0x4 - core index']
  #allocation1 [shape = 'u32[72,128]{1,0:T(1,128)}', space=vmem, size = 0x9000, scoped, tag = 'internal scratch']
  %s0 = inlined_call_operand.hbm [shape: f32[8,16,128], index: 0, kind: input, shape index: {}]
  %s1 = inlined_call_operand.hbm [shape: f32[8,16,128], index: 1, kind: input, shape index: {}]
  %s2 = inlined_call_operand.hbm [shape: f32[8,16,128], index: 2, kind: input, shape index: {}]
  %s3 = inlined_call_operand.hbm [shape: f32[8,16,128], index: 3, kind: output, shape index: {}]
  %s4 = sld [smem:[#allocation0]]
  $region34: #{tpu_custom_call.1} parent=0
    _
  %s6 = ssub.s32 1, %s4
  %s7 = scalar_select 0, %s6, %s4
  $region1: #{tpu_custom_call.1} parent=0
    #allocation2 [shape = 'u8[65536]{0}', space=vmem, size = 0x10000, scoped, tag = 'input window, operand 0, single buffered']
    #allocation3 [shape = 's32[1]{0}', space=sflag, size = 0x4, scoped, tag = 'scoped memory for tpu_custom_call.1']
    #allocation4 [shape = 's32[1]{0}', space=sflag, size = 0x4, scoped, tag = 'scoped memory for tpu_custom_call.1']
    #allocation5 [shape = 'u8[65536]{0}', space=vmem, size = 0x10000, scoped, tag = 'input window, operand 1, single buffered']
    #allocation6 [shape = 's32[1]{0}', space=sflag, size = 0x4, scoped, tag = 'scoped memory for tpu_custom_call.1']
    #allocation7 [shape = 'u8[65536]{0}', space=vmem, size = 0x10000, scoped, tag = 'input window, operand 2, single buffered']
    #allocation8 [shape = 'u8[65536]{0}', space=vmem, size = 0x10000, scoped, tag = 'output window, operand 0, single buffered']
    %8 = vsyncpa [#allocation3], 0
    %9 = vsyncpa [#allocation6], 0
    %10 = vsyncpa [#allocation4], 0
    // Predicated region
    $region2: #{tpu_custom_call.1} parent=1 // pred_check
      _
    $region3: #{tpu_custom_call.1} parent=1 // pred_check_branch
      %12 = sbr.rel (0) target = $region5
    $region4: #{tpu_custom_call.1} parent=1 // pred_region
      %14 = vsyncadd [#allocation3], 0
      %s15 = sshll.u32 %s0, 4
      %s16 = int_to_ptr.hbm [resolvable:$true] %s15
      %s17 = sshll.u32 [#allocation2], 4
      %s18 = int_to_ptr.vmem [resolvable:$true] %s17
      %23 = dma.hbm_to_vmem [thread:$0]  %s16, 2048, %s18, [#allocation3], 128, 128, 8
    $region5: #{tpu_custom_call.1} parent=1 // pred_fallthru
      _
    // Predicated region
    $region6: #{tpu_custom_call.1} parent=1 // pred_check
      _
    $region7: #{tpu_custom_call.1} parent=1 // pred_check_branch
      %25 = sbr.rel (0) target = $region9
    $region8: #{tpu_custom_call.1} parent=1 // pred_region
      %27 = vsyncadd [#allocation6], 0
      %s28 = sshll.u32 %s1, 4
      %s29 = int_to_ptr.hbm [resolvable:$true] %s28
      %s30 = sshll.u32 [#allocation5], 4
      %s31 = int_to_ptr.vmem [resolvable:$true] %s30
      %36 = dma.hbm_to_vmem [thread:$0]  %s29, 2048, %s31, [#allocation6], 128, 128, 8
    $region9: #{tpu_custom_call.1} parent=1 // pred_fallthru
      _
    // Predicated region
    $region10: #{tpu_custom_call.1} parent=1 // pred_check
      _
    $region11: #{tpu_custom_call.1} parent=1 // pred_check_branch
      %38 = sbr.rel (0) target = $region13
    $region12: #{tpu_custom_call.1} parent=1 // pred_region
      %40 = vsyncadd [#allocation6], 0
      %s41 = sshll.u32 %s2, 4
      %s42 = int_to_ptr.hbm [resolvable:$true] %s41
      %s43 = sshll.u32 [#allocation7], 4
      %s44 = int_to_ptr.vmem [resolvable:$true] %s43
      %49 = dma.hbm_to_vmem [thread:$0]  %s42, 2048, %s44, [#allocation6], 128, 128, 8
    $region13: #{tpu_custom_call.1} parent=1 // pred_fallthru
      _
    // Predicated region
    $region14: #{tpu_custom_call.1} parent=1 // pred_check
      _
    $region15: #{tpu_custom_call.1} parent=1 // pred_check_branch
      %51 = sbr.rel (0) target = $region17
    $region16: #{tpu_custom_call.1} parent=1 // pred_region
      %53 = dma.done [#allocation3], 2048
    $region17: #{tpu_custom_call.1} parent=1 // pred_fallthru
      _
    // Predicated region
    $region18: #{tpu_custom_call.1} parent=1 // pred_check
      _
    $region19: #{tpu_custom_call.1} parent=1 // pred_check_branch
      %55 = sbr.rel (0) target = $region21
    $region20: #{tpu_custom_call.1} parent=1 // pred_region
      %57 = dma.done [#allocation6], 2048
    $region21: #{tpu_custom_call.1} parent=1 // pred_fallthru
      _
    // Predicated region
    $region22: #{tpu_custom_call.1} parent=1 // pred_check
      _
    $region23: #{tpu_custom_call.1} parent=1 // pred_check_branch
      %59 = sbr.rel (0) target = $region25
    $region24: #{tpu_custom_call.1} parent=1 // pred_region
      %61 = dma.done [#allocation6], 2048
    $region25: #{tpu_custom_call.1} parent=1 // pred_fallthru
      _
    %v62 = vld [vmem:[#allocation2] sm:$0xff]
    %v63 = vld [vmem:[#allocation2 + $0x8] sm:$0xff]
    %v64 = vld [vmem:[#allocation2 + $0x10] sm:$0xff]
    %v65 = vld [vmem:[#allocation2 + $0x18] sm:$0xff]
    %v66 = vld [vmem:[#allocation2 + $0x20] sm:$0xff]
    %v67 = vld [vmem:[#allocation2 + $0x28] sm:$0xff]
    %v68 = vld [vmem:[#allocation2 + $0x30] sm:$0xff]
    %v69 = vld [vmem:[#allocation2 + $0x38] sm:$0xff]
    %v70 = vld [vmem:[#allocation2 + $0x40] sm:$0xff]
    %v71 = vld [vmem:[#allocation2 + $0x48] sm:$0xff]
    %v72 = vld [vmem:[#allocation2 + $0x50] sm:$0xff]
    %v73 = vld [vmem:[#allocation2 + $0x58] sm:$0xff]
    %v74 = vld [vmem:[#allocation2 + $0x60] sm:$0xff]
    %v75 = vld [vmem:[#allocation2 + $0x68] sm:$0xff]
    %v76 = vld [vmem:[#allocation2 + $0x70] sm:$0xff]
    %v77 = vld [vmem:[#allocation2 + $0x78] sm:$0xff]
    %v78 = vld [vmem:[#allocation5] sm:$0xff]
    %v79 = vld [vmem:[#allocation5 + $0x8] sm:$0xff]
    %v80 = vld [vmem:[#allocation5 + $0x10] sm:$0xff]
    %v81 = vld [vmem:[#allocation5 + $0x18] sm:$0xff]
    %v82 = vld [vmem:[#allocation5 + $0x20] sm:$0xff]
    %v83 = vld [vmem:[#allocation5 + $0x28] sm:$0xff]
    %v84 = vld [vmem:[#allocation5 + $0x30] sm:$0xff]
    %v85 = vld [vmem:[#allocation5 + $0x38] sm:$0xff]
    %v86 = vld [vmem:[#allocation5 + $0x40] sm:$0xff]
    %v87 = vld [vmem:[#allocation5 + $0x48] sm:$0xff]
    %v88 = vld [vmem:[#allocation5 + $0x50] sm:$0xff]
    %v89 = vld [vmem:[#allocation5 + $0x58] sm:$0xff]
    %v90 = vld [vmem:[#allocation5 + $0x60] sm:$0xff]
    %v91 = vld [vmem:[#allocation5 + $0x68] sm:$0xff]
    %v92 = vld [vmem:[#allocation5 + $0x70] sm:$0xff]
    %v93 = vld [vmem:[#allocation5 + $0x78] sm:$0xff]
    %v94 = vld [vmem:[#allocation7] sm:$0xff]
    %v95 = vld [vmem:[#allocation7 + $0x8] sm:$0xff]
    %v96 = vld [vmem:[#allocation7 + $0x10] sm:$0xff]
    %v97 = vld [vmem:[#allocation7 + $0x18] sm:$0xff]
    %v98 = vld [vmem:[#allocation7 + $0x20] sm:$0xff]
    %v99 = vld [vmem:[#allocation7 + $0x28] sm:$0xff]
    %v100 = vld [vmem:[#allocation7 + $0x30] sm:$0xff]
    %v101 = vld [vmem:[#allocation7 + $0x38] sm:$0xff]
    %v102 = vld [vmem:[#allocation7 + $0x40] sm:$0xff]
    %v103 = vld [vmem:[#allocation7 + $0x48] sm:$0xff]
    %v104 = vld [vmem:[#allocation7 + $0x50] sm:$0xff]
    %v105 = vld [vmem:[#allocation7 + $0x58] sm:$0xff]
    %v106 = vld [vmem:[#allocation7 + $0x60] sm:$0xff]
    %v107 = vld [vmem:[#allocation7 + $0x68] sm:$0xff]
    %v108 = vld [vmem:[#allocation7 + $0x70] sm:$0xff]
    %v109 = vld [vmem:[#allocation7 + $0x78] sm:$0xff]
    %110 = vmatpush.xpose.msra.mxu0 %v93
    %111 = vmatpush.xpose.msra.mxu0 %v92
    %112 = vmatpush.xpose.msra.mxu0 %v91
    %113 = vmatpush.xpose.msra.mxu0 %v90
    %114 = vmatpush.xpose.msra.mxu0 %v89
    %115 = vmatpush.xpose.msra.mxu0 %v88
    %116 = vmatpush.xpose.msra.mxu0 %v87
    %117 = vmatpush.xpose.msra.mxu0 %v86
    %118 = vmatpush.xpose.msra.mxu0 %v85
    %119 = vmatpush.xpose.msra.mxu0 %v84
    %120 = vmatpush.xpose.msra.mxu0 %v83
    %121 = vmatpush.xpose.msra.mxu0 %v82
    %122 = vmatpush.xpose.msra.mxu0 %v81
    %123 = vmatpush.xpose.msra.mxu0 %v80
    %124 = vmatpush.xpose.msra.mxu0 %v79
    %125 = vmatpush.xpose.msra.mxu0 %v78
    %126 = vmatmul.f32.gmra.mxu0 %v62
    %v127 = vpop.f32.mrf.mxu0
    %v128 = vadd.f32 0.0, %v127
    %129 = vmatmul.f32.gmra.mxu0 %v63
    %v130 = vpop.f32.mrf.mxu0
    %v131 = vadd.f32 0.0, %v130
    %132 = vmatmul.f32.gmra.mxu0 %v64
    %v133 = vpop.f32.mrf.mxu0
    %v134 = vadd.f32 0.0, %v133
    %135 = vmatmul.f32.gmra.mxu0 %v65
    %v136 = vpop.f32.mrf.mxu0
    %v137 = vadd.f32 0.0, %v136
    %138 = vmatmul.f32.gmra.mxu0 %v66
    %v139 = vpop.f32.mrf.mxu0
    %v140 = vadd.f32 0.0, %v139
    %141 = vmatmul.f32.gmra.mxu0 %v67
    %v142 = vpop.f32.mrf.mxu0
    %v143 = vadd.f32 0.0, %v142
    %144 = vmatmul.f32.gmra.mxu0 %v68
    %v145 = vpop.f32.mrf.mxu0
    %v146 = vadd.f32 0.0, %v145
    %147 = vmatmul.f32.gmra.mxu0 %v69
    %v148 = vpop.f32.mrf.mxu0
    %v149 = vadd.f32 0.0, %v148
    %150 = vmatmul.f32.gmra.mxu0 %v70
    %v151 = vpop.f32.mrf.mxu0
    %v152 = vadd.f32 0.0, %v151
    %153 = vmatmul.f32.gmra.mxu0 %v71
    %v154 = vpop.f32.mrf.mxu0
    %v155 = vadd.f32 0.0, %v154
    %156 = vmatmul.f32.gmra.mxu0 %v72
    %v157 = vpop.f32.mrf.mxu0
    %v158 = vadd.f32 0.0, %v157
    %159 = vmatmul.f32.gmra.mxu0 %v73
    %v160 = vpop.f32.mrf.mxu0
    %v161 = vadd.f32 0.0, %v160
    %162 = vmatmul.f32.gmra.mxu0 %v74
    %v163 = vpop.f32.mrf.mxu0
    %v164 = vadd.f32 0.0, %v163
    %165 = vmatmul.f32.gmra.mxu0 %v75
    %v166 = vpop.f32.mrf.mxu0
    %v167 = vadd.f32 0.0, %v166
    %168 = vmatmul.f32.gmra.mxu0 %v76
    %v169 = vpop.f32.mrf.mxu0
    %v170 = vadd.f32 0.0, %v169
    %171 = vmatmul.f32.gmra.mxu0 %v77
    %v172 = vpop.f32.mrf.mxu0
    %v173 = vadd.f32 0.0, %v172
    %174 = vdwg.mxu0
    %v175 = vmul.f32 %v128, 11.313708
    %v176 = vmul.f32 %v131, 11.313708
    %v177 = vmul.f32 %v134, 11.313708
    %v178 = vmul.f32 %v137, 11.313708
    %v179 = vmul.f32 %v140, 11.313708
    %v180 = vmul.f32 %v143, 11.313708
    %v181 = vmul.f32 %v146, 11.313708
    %v182 = vmul.f32 %v149, 11.313708
    %v183 = vmul.f32 %v152, 11.313708
    %v184 = vmul.f32 %v155, 11.313708
    %v185 = vmul.f32 %v158, 11.313708
    %v186 = vmul.f32 %v161, 11.313708
    %v187 = vmul.f32 %v164, 11.313708
    %v188 = vmul.f32 %v167, 11.313708
    %v189 = vmul.f32 %v170, 11.313708
    %v190 = vmul.f32 %v173, 11.313708
    %v191 = vlaneseq
    %v192 = vand.u32 %v191, 127
    %vm193 = vcmp.ge.s32.totalorder %v192, 0
    %vm194 = vcmp.ge.s32.totalorder %v192, 16
    %vm195 = vcmp.ge.s32.totalorder %v192, 32
    %vm196 = vcmp.ge.s32.totalorder %v192, 48
    %vm197 = vcmp.ge.s32.totalorder %v192, 64
    %vm198 = vcmp.ge.s32.totalorder %v192, 80
    %vm199 = vcmp.ge.s32.totalorder %v192, 96
    %vm200 = vcmp.ge.s32.totalorder %v192, 112
    %vm201 = vcmp.lt.s32.totalorder %v192, 16
    %vm202 = vcmp.lt.s32.totalorder %v192, 32
    %vm203 = vcmp.lt.s32.totalorder %v192, 48
    %vm204 = vcmp.lt.s32.totalorder %v192, 64
    %vm205 = vcmp.lt.s32.totalorder %v192, 80
    %vm206 = vcmp.lt.s32.totalorder %v192, 96
    %vm207 = vcmp.lt.s32.totalorder %v192, 112
    %vm208 = vcmp.lt.s32.totalorder %v192, 128
    %vm209 = vmand %vm193, %vm201
    %vm210 = vmand %vm194, %vm202
    %vm211 = vmand %vm195, %vm203
    %vm212 = vmand %vm196, %vm204
    %vm213 = vmand %vm197, %vm205
    %vm214 = vmand %vm198, %vm206
    %vm215 = vmand %vm199, %vm207
    %vm216 = vmand %vm200, %vm208
    %v217 = vsel %vm209, %v175, -1e+30
    %v218 = vsel %vm209, %v176, -1e+30
    %v219 = vsel %vm210, %v177, -1e+30
    %v220 = vsel %vm210, %v178, -1e+30
    %v221 = vsel %vm211, %v179, -1e+30
    %v222 = vsel %vm211, %v180, -1e+30
    %v223 = vsel %vm212, %v181, -1e+30
    %v224 = vsel %vm212, %v182, -1e+30
    %v225 = vsel %vm213, %v183, -1e+30
    %v226 = vsel %vm213, %v184, -1e+30
    %v227 = vsel %vm214, %v185, -1e+30
    %v228 = vsel %vm214, %v186, -1e+30
    %v229 = vsel %vm215, %v187, -1e+30
    %v230 = vsel %vm215, %v188, -1e+30
    %v231 = vsel %vm216, %v189, -1e+30
    %v232 = vsel %vm216, %v190, -1e+30
    %233 = vmax.xlane.f32.xlu0 %v217
    %v234 = vpop.xlane.xlu0 %233
    %235 = vmax.xlane.f32.xlu0 %v218
    %v236 = vpop.xlane.xlu0 %235
    %237 = vmax.xlane.f32.xlu0 %v219
    %v238 = vpop.xlane.xlu0 %237
    %239 = vmax.xlane.f32.xlu0 %v220
    %v240 = vpop.xlane.xlu0 %239
    %241 = vmax.xlane.f32.xlu0 %v221
    %v242 = vpop.xlane.xlu0 %241
    %243 = vmax.xlane.f32.xlu0 %v222
    %v244 = vpop.xlane.xlu0 %243
    %245 = vmax.xlane.f32.xlu0 %v223
    %v246 = vpop.xlane.xlu0 %245
    %247 = vmax.xlane.f32.xlu0 %v224
    %v248 = vpop.xlane.xlu0 %247
    %249 = vmax.xlane.f32.xlu0 %v225
    %v250 = vpop.xlane.xlu0 %249
    %251 = vmax.xlane.f32.xlu0 %v226
    %v252 = vpop.xlane.xlu0 %251
    %253 = vmax.xlane.f32.xlu0 %v227
    %v254 = vpop.xlane.xlu0 %253
    %255 = vmax.xlane.f32.xlu0 %v228
    %v256 = vpop.xlane.xlu0 %255
    %257 = vmax.xlane.f32.xlu0 %v229
    %v258 = vpop.xlane.xlu0 %257
    %259 = vmax.xlane.f32.xlu0 %v230
    %v260 = vpop.xlane.xlu0 %259
    %261 = vmax.xlane.f32.xlu0 %v231
    %v262 = vpop.xlane.xlu0 %261
    %263 = vmax.xlane.f32.xlu0 %v232
    %v264 = vpop.xlane.xlu0 %263
    %v265 = vsub.f32 %v217, %v234
    %v266 = vsub.f32 %v218, %v236
    %v267 = vsub.f32 %v219, %v238
    %v268 = vsub.f32 %v220, %v240
    %v269 = vsub.f32 %v221, %v242
    %v270 = vsub.f32 %v222, %v244
    %v271 = vsub.f32 %v223, %v246
    %v272 = vsub.f32 %v224, %v248
    %v273 = vsub.f32 %v225, %v250
    %v274 = vsub.f32 %v226, %v252
    %v275 = vsub.f32 %v227, %v254
    %v276 = vsub.f32 %v228, %v256
    %v277 = vsub.f32 %v229, %v258
    %v278 = vsub.f32 %v230, %v260
    %v279 = vsub.f32 %v231, %v262
    %v280 = vsub.f32 %v232, %v264
    %v281 = vmul.f32 %v265, 1.442695
    %v282 = vpow.pop %v281
    %v283 = vmul.f32 %v266, 1.442695
    %v284 = vpow.pop %v283
    %v285 = vmul.f32 %v267, 1.442695
    %v286 = vpow.pop %v285
    %v287 = vmul.f32 %v268, 1.442695
    %v288 = vpow.pop %v287
    %v289 = vmul.f32 %v269, 1.442695
    %v290 = vpow.pop %v289
    %v291 = vmul.f32 %v270, 1.442695
    %v292 = vpow.pop %v291
    %v293 = vmul.f32 %v271, 1.442695
    %v294 = vpow.pop %v293
    %v295 = vmul.f32 %v272, 1.442695
    %v296 = vpow.pop %v295
    %v297 = vmul.f32 %v273, 1.442695
    %v298 = vpow.pop %v297
    %v299 = vmul.f32 %v274, 1.442695
    %v300 = vpow.pop %v299
    %v301 = vmul.f32 %v275, 1.442695
    %v302 = vpow.pop %v301
    %v303 = vmul.f32 %v276, 1.442695
    %v304 = vpow.pop %v303
    %v305 = vmul.f32 %v277, 1.442695
    %v306 = vpow.pop %v305
    %v307 = vmul.f32 %v278, 1.442695
    %v308 = vpow.pop %v307
    %v309 = vmul.f32 %v279, 1.442695
    %v310 = vpow.pop %v309
    %v311 = vmul.f32 %v280, 1.442695
    %v312 = vpow.pop %v311
    %313 = vadd.xlane.f32.xlu0 %v282
    %v314 = vpop.xlane.xlu0 %313
    %315 = vadd.xlane.f32.xlu0 %v284
    %v316 = vpop.xlane.xlu0 %315
    %317 = vadd.xlane.f32.xlu0 %v286
    %v318 = vpop.xlane.xlu0 %317
    %319 = vadd.xlane.f32.xlu0 %v288
    %v320 = vpop.xlane.xlu0 %319
    %321 = vadd.xlane.f32.xlu0 %v290
    %v322 = vpop.xlane.xlu0 %321
    %323 = vadd.xlane.f32.xlu0 %v292
    %v324 = vpop.xlane.xlu0 %323
    %325 = vadd.xlane.f32.xlu0 %v294
    %v326 = vpop.xlane.xlu0 %325
    %327 = vadd.xlane.f32.xlu0 %v296
    %v328 = vpop.xlane.xlu0 %327
    %329 = vadd.xlane.f32.xlu0 %v298
    %v330 = vpop.xlane.xlu0 %329
    %331 = vadd.xlane.f32.xlu0 %v300
    %v332 = vpop.xlane.xlu0 %331
    %333 = vadd.xlane.f32.xlu0 %v302
    %v334 = vpop.xlane.xlu0 %333
    %335 = vadd.xlane.f32.xlu0 %v304
    %v336 = vpop.xlane.xlu0 %335
    %337 = vadd.xlane.f32.xlu0 %v306
    %v338 = vpop.xlane.xlu0 %337
    %339 = vadd.xlane.f32.xlu0 %v308
    %v340 = vpop.xlane.xlu0 %339
    %341 = vadd.xlane.f32.xlu0 %v310
    %v342 = vpop.xlane.xlu0 %341
    %343 = vadd.xlane.f32.xlu0 %v312
    %v344 = vpop.xlane.xlu0 %343
    %v345 = vrcp.pop %v314
    %v346 = vmul.f32 %v314, %v345
    %v347 = vsub.f32 1.0, %v346
    %v348 = vmul.f32 %v345, %v347
    %v349 = vadd.f32 %v345, %v348
    %vm350 = vweird.f32 %v314
    %vm351 = vweird.f32 %v345
    %vm352 = vmor %vm350, %vm351
    %v353 = vsel %vm352, %v345, %v349
    %v354 = vand.u32 2147483647, %v314
    %vm355 = vcmp.eq.f32.partialorder %v354, 8.507059e+37
    %v356 = vand.u32 %v314, 2147483648
    %v357 = vor.u32 1.1754944e-38, %v356
    %v358 = vsel %vm355, %v357, %v353
    %v359 = vmul.f32 1.0, %v358
    %v360 = vrcp.pop %v316
    %v361 = vmul.f32 %v316, %v360
    %v362 = vsub.f32 1.0, %v361
    %v363 = vmul.f32 %v360, %v362
    %v364 = vadd.f32 %v360, %v363
    %vm365 = vweird.f32 %v316
    %vm366 = vweird.f32 %v360
    %vm367 = vmor %vm365, %vm366
    %v368 = vsel %vm367, %v360, %v364
    %v369 = vand.u32 2147483647, %v316
    %vm370 = vcmp.eq.f32.partialorder %v369, 8.507059e+37
    %v371 = vand.u32 %v316, 2147483648
    %v372 = vor.u32 1.1754944e-38, %v371
    %v373 = vsel %vm370, %v372, %v368
    %v374 = vmul.f32 1.0, %v373
    %v375 = vrcp.pop %v318
    %v376 = vmul.f32 %v318, %v375
    %v377 = vsub.f32 1.0, %v376
    %v378 = vmul.f32 %v375, %v377
    %v379 = vadd.f32 %v375, %v378
    %vm380 = vweird.f32 %v318
    %vm381 = vweird.f32 %v375
    %vm382 = vmor %vm380, %vm381
    %v383 = vsel %vm382, %v375, %v379
    %v384 = vand.u32 2147483647, %v318
    %vm385 = vcmp.eq.f32.partialorder %v384, 8.507059e+37
    %v386 = vand.u32 %v318, 2147483648
    %v387 = vor.u32 1.1754944e-38, %v386
    %v388 = vsel %vm385, %v387, %v383
    %v389 = vmul.f32 1.0, %v388
    %v390 = vrcp.pop %v320
    %v391 = vmul.f32 %v320, %v390
    %v392 = vsub.f32 1.0, %v391
    %v393 = vmul.f32 %v390, %v392
    %v394 = vadd.f32 %v390, %v393
    %vm395 = vweird.f32 %v320
    %vm396 = vweird.f32 %v390
    %vm397 = vmor %vm395, %vm396
    %v398 = vsel %vm397, %v390, %v394
    %v399 = vand.u32 2147483647, %v320
    %vm400 = vcmp.eq.f32.partialorder %v399, 8.507059e+37
    %v401 = vand.u32 %v320, 2147483648
    %v402 = vor.u32 1.1754944e-38, %v401
    %v403 = vsel %vm400, %v402, %v398
    %v404 = vmul.f32 1.0, %v403
    %v405 = vrcp.pop %v322
    %v406 = vmul.f32 %v322, %v405
    %v407 = vsub.f32 1.0, %v406
    %v408 = vmul.f32 %v405, %v407
    %v409 = vadd.f32 %v405, %v408
    %vm410 = vweird.f32 %v322
    %vm411 = vweird.f32 %v405
    %vm412 = vmor %vm410, %vm411
    %v413 = vsel %vm412, %v405, %v409
    %v414 = vand.u32 2147483647, %v322
    %vm415 = vcmp.eq.f32.partialorder %v414, 8.507059e+37
    %v416 = vand.u32 %v322, 2147483648
    %v417 = vor.u32 1.1754944e-38, %v416
    %v418 = vsel %vm415, %v417, %v413
    %v419 = vmul.f32 1.0, %v418
    %v420 = vrcp.pop %v324
    %v421 = vmul.f32 %v324, %v420
    %v422 = vsub.f32 1.0, %v421
    %v423 = vmul.f32 %v420, %v422
    %v424 = vadd.f32 %v420, %v423
    %vm425 = vweird.f32 %v324
    %vm426 = vweird.f32 %v420
    %vm427 = vmor %vm425, %vm426
    %v428 = vsel %vm427, %v420, %v424
    %v429 = vand.u32 2147483647, %v324
    %vm430 = vcmp.eq.f32.partialorder %v429, 8.507059e+37
    %v431 = vand.u32 %v324, 2147483648
    %v432 = vor.u32 1.1754944e-38, %v431
    %v433 = vsel %vm430, %v432, %v428
    %v434 = vmul.f32 1.0, %v433
    %v435 = vrcp.pop %v326
    %v436 = vmul.f32 %v326, %v435
    %v437 = vsub.f32 1.0, %v436
    %v438 = vmul.f32 %v435, %v437
    %v439 = vadd.f32 %v435, %v438
    %vm440 = vweird.f32 %v326
    %vm441 = vweird.f32 %v435
    %vm442 = vmor %vm440, %vm441
    %v443 = vsel %vm442, %v435, %v439
    %v444 = vand.u32 2147483647, %v326
    %vm445 = vcmp.eq.f32.partialorder %v444, 8.507059e+37
    %v446 = vand.u32 %v326, 2147483648
    %v447 = vor.u32 1.1754944e-38, %v446
    %v448 = vsel %vm445, %v447, %v443
    %v449 = vmul.f32 1.0, %v448
    %v450 = vrcp.pop %v328
    %v451 = vmul.f32 %v328, %v450
    %v452 = vsub.f32 1.0, %v451
    %v453 = vmul.f32 %v450, %v452
    %v454 = vadd.f32 %v450, %v453
    %vm455 = vweird.f32 %v328
    %vm456 = vweird.f32 %v450
    %vm457 = vmor %vm455, %vm456
    %v458 = vsel %vm457, %v450, %v454
    %v459 = vand.u32 2147483647, %v328
    %vm460 = vcmp.eq.f32.partialorder %v459, 8.507059e+37
    %v461 = vand.u32 %v328, 2147483648
    %v462 = vor.u32 1.1754944e-38, %v461
    %v463 = vsel %vm460, %v462, %v458
    %v464 = vmul.f32 1.0, %v463
    %v465 = vrcp.pop %v330
    %v466 = vmul.f32 %v330, %v465
    %v467 = vsub.f32 1.0, %v466
    %v468 = vmul.f32 %v465, %v467
    %v469 = vadd.f32 %v465, %v468
    %vm470 = vweird.f32 %v330
    %vm471 = vweird.f32 %v465
    %vm472 = vmor %vm470, %vm471
    %v473 = vsel %vm472, %v465, %v469
    %v474 = vand.u32 2147483647, %v330
    %vm475 = vcmp.eq.f32.partialorder %v474, 8.507059e+37
    %v476 = vand.u32 %v330, 2147483648
    %v477 = vor.u32 1.1754944e-38, %v476
    %v478 = vsel %vm475, %v477, %v473
    %v479 = vmul.f32 1.0, %v478
    %v480 = vrcp.pop %v332
    %v481 = vmul.f32 %v332, %v480
    %v482 = vsub.f32 1.0, %v481
    %v483 = vmul.f32 %v480, %v482
    %v484 = vadd.f32 %v480, %v483
    %vm485 = vweird.f32 %v332
    %vm486 = vweird.f32 %v480
    %vm487 = vmor %vm485, %vm486
    %v488 = vsel %vm487, %v480, %v484
    %v489 = vand.u32 2147483647, %v332
    %vm490 = vcmp.eq.f32.partialorder %v489, 8.507059e+37
    %v491 = vand.u32 %v332, 2147483648
    %v492 = vor.u32 1.1754944e-38, %v491
    %v493 = vsel %vm490, %v492, %v488
    %v494 = vmul.f32 1.0, %v493
    %v495 = vrcp.pop %v334
    %v496 = vmul.f32 %v334, %v495
    %v497 = vsub.f32 1.0, %v496
    %v498 = vmul.f32 %v495, %v497
    %v499 = vadd.f32 %v495, %v498
    %vm500 = vweird.f32 %v334
    %vm501 = vweird.f32 %v495
    %vm502 = vmor %vm500, %vm501
    %v503 = vsel %vm502, %v495, %v499
    %v504 = vand.u32 2147483647, %v334
    %vm505 = vcmp.eq.f32.partialorder %v504, 8.507059e+37
    %v506 = vand.u32 %v334, 2147483648
    %v507 = vor.u32 1.1754944e-38, %v506
    %v508 = vsel %vm505, %v507, %v503
    %v509 = vmul.f32 1.0, %v508
    %v510 = vrcp.pop %v336
    %v511 = vmul.f32 %v336, %v510
    %v512 = vsub.f32 1.0, %v511
    %v513 = vmul.f32 %v510, %v512
    %v514 = vadd.f32 %v510, %v513
    %vm515 = vweird.f32 %v336
    %vm516 = vweird.f32 %v510
    %vm517 = vmor %vm515, %vm516
    %v518 = vsel %vm517, %v510, %v514
    %v519 = vand.u32 2147483647, %v336
    %vm520 = vcmp.eq.f32.partialorder %v519, 8.507059e+37
    %v521 = vand.u32 %v336, 2147483648
    %v522 = vor.u32 1.1754944e-38, %v521
    %v523 = vsel %vm520, %v522, %v518
    %v524 = vmul.f32 1.0, %v523
    %v525 = vrcp.pop %v338
    %v526 = vmul.f32 %v338, %v525
    %v527 = vsub.f32 1.0, %v526
    %v528 = vmul.f32 %v525, %v527
    %v529 = vadd.f32 %v525, %v528
    %vm530 = vweird.f32 %v338
    %vm531 = vweird.f32 %v525
    %vm532 = vmor %vm530, %vm531
    %v533 = vsel %vm532, %v525, %v529
    %v534 = vand.u32 2147483647, %v338
    %vm535 = vcmp.eq.f32.partialorder %v534, 8.507059e+37
    %v536 = vand.u32 %v338, 2147483648
    %v537 = vor.u32 1.1754944e-38, %v536
    %v538 = vsel %vm535, %v537, %v533
    %v539 = vmul.f32 1.0, %v538
    %v540 = vrcp.pop %v340
    %v541 = vmul.f32 %v340, %v540
    %v542 = vsub.f32 1.0, %v541
    %v543 = vmul.f32 %v540, %v542
    %v544 = vadd.f32 %v540, %v543
    %vm545 = vweird.f32 %v340
    %vm546 = vweird.f32 %v540
    %vm547 = vmor %vm545, %vm546
    %v548 = vsel %vm547, %v540, %v544
    %v549 = vand.u32 2147483647, %v340
    %vm550 = vcmp.eq.f32.partialorder %v549, 8.507059e+37
    %v551 = vand.u32 %v340, 2147483648
    %v552 = vor.u32 1.1754944e-38, %v551
    %v553 = vsel %vm550, %v552, %v548
    %v554 = vmul.f32 1.0, %v553
    %v555 = vrcp.pop %v342
    %v556 = vmul.f32 %v342, %v555
    %v557 = vsub.f32 1.0, %v556
    %v558 = vmul.f32 %v555, %v557
    %v559 = vadd.f32 %v555, %v558
    %vm560 = vweird.f32 %v342
    %vm561 = vweird.f32 %v555
    %vm562 = vmor %vm560, %vm561
    %v563 = vsel %vm562, %v555, %v559
    %v564 = vand.u32 2147483647, %v342
    %vm565 = vcmp.eq.f32.partialorder %v564, 8.507059e+37
    %v566 = vand.u32 %v342, 2147483648
    %v567 = vor.u32 1.1754944e-38, %v566
    %v568 = vsel %vm565, %v567, %v563
    %v569 = vmul.f32 1.0, %v568
    %v570 = vrcp.pop %v344
    %v571 = vmul.f32 %v344, %v570
    %v572 = vsub.f32 1.0, %v571
    %v573 = vmul.f32 %v570, %v572
    %v574 = vadd.f32 %v570, %v573
    %vm575 = vweird.f32 %v344
    %vm576 = vweird.f32 %v570
    %vm577 = vmor %vm575, %vm576
    %v578 = vsel %vm577, %v570, %v574
    %v579 = vand.u32 2147483647, %v344
    %vm580 = vcmp.eq.f32.partialorder %v579, 8.507059e+37
    %v581 = vand.u32 %v344, 2147483648
    %v582 = vor.u32 1.1754944e-38, %v581
    %v583 = vsel %vm580, %v582, %v578
    %v584 = vmul.f32 1.0, %v583
    %v585 = vmul.f32 %v282, %v359
    %v586 = vmul.f32 %v284, %v374
    %v587 = vmul.f32 %v286, %v389
    %v588 = vmul.f32 %v288, %v404
    %v589 = vmul.f32 %v290, %v419
    %v590 = vmul.f32 %v292, %v434
    %v591 = vmul.f32 %v294, %v449
    %v592 = vmul.f32 %v296, %v464
    %v593 = vmul.f32 %v298, %v479
    %v594 = vmul.f32 %v300, %v494
    %v595 = vmul.f32 %v302, %v509
    %v596 = vmul.f32 %v304, %v524
    %v597 = vmul.f32 %v306, %v539
    %v598 = vmul.f32 %v308, %v554
    %v599 = vmul.f32 %v310, %v569
    %v600 = vmul.f32 %v312, %v584
    %601 = vmatpush.msra.mxu0 %v109
    %602 = vmatpush.msra.mxu0 %v108
    %603 = vmatpush.msra.mxu0 %v107
    %604 = vmatpush.msra.mxu0 %v106
    %605 = vmatpush.msra.mxu0 %v105
    %606 = vmatpush.msra.mxu0 %v104
    %607 = vmatpush.msra.mxu0 %v103
    %608 = vmatpush.msra.mxu0 %v102
    %609 = vmatpush.msra.mxu0 %v101
    %610 = vmatpush.msra.mxu0 %v100
    %611 = vmatpush.msra.mxu0 %v99
    %612 = vmatpush.msra.mxu0 %v98
    %613 = vmatpush.msra.mxu0 %v97
    %614 = vmatpush.msra.mxu0 %v96
    %615 = vmatpush.msra.mxu0 %v95
    %616 = vmatpush.msra.mxu0 %v94
    %617 = vmatmul.f32.gmra.mxu0 %v585
    %v618 = vpop.f32.mrf.mxu0
    %v619 = vadd.f32 0.0, %v618
    %620 = vmatmul.f32.gmra.mxu0 %v586
    %v621 = vpop.f32.mrf.mxu0
    %v622 = vadd.f32 0.0, %v621
    %623 = vmatmul.f32.gmra.mxu0 %v587
    %v624 = vpop.f32.mrf.mxu0
    %v625 = vadd.f32 0.0, %v624
    %626 = vmatmul.f32.gmra.mxu0 %v588
    %v627 = vpop.f32.mrf.mxu0
    %v628 = vadd.f32 0.0, %v627
    %629 = vmatmul.f32.gmra.mxu0 %v589
    %v630 = vpop.f32.mrf.mxu0
    %v631 = vadd.f32 0.0, %v630
    %632 = vmatmul.f32.gmra.mxu0 %v590
    %v633 = vpop.f32.mrf.mxu0
    %v634 = vadd.f32 0.0, %v633
    %635 = vmatmul.f32.gmra.mxu0 %v591
    %v636 = vpop.f32.mrf.mxu0
    %v637 = vadd.f32 0.0, %v636
    %638 = vmatmul.f32.gmra.mxu0 %v592
    %v639 = vpop.f32.mrf.mxu0
    %v640 = vadd.f32 0.0, %v639
    %641 = vmatmul.f32.gmra.mxu0 %v593
    %v642 = vpop.f32.mrf.mxu0
    %v643 = vadd.f32 0.0, %v642
    %644 = vmatmul.f32.gmra.mxu0 %v594
    %v645 = vpop.f32.mrf.mxu0
    %v646 = vadd.f32 0.0, %v645
    %647 = vmatmul.f32.gmra.mxu0 %v595
    %v648 = vpop.f32.mrf.mxu0
    %v649 = vadd.f32 0.0, %v648
    %650 = vmatmul.f32.gmra.mxu0 %v596
    %v651 = vpop.f32.mrf.mxu0
    %v652 = vadd.f32 0.0, %v651
    %653 = vmatmul.f32.gmra.mxu0 %v597
    %v654 = vpop.f32.mrf.mxu0
    %v655 = vadd.f32 0.0, %v654
    %656 = vmatmul.f32.gmra.mxu0 %v598
    %v657 = vpop.f32.mrf.mxu0
    %v658 = vadd.f32 0.0, %v657
    %659 = vmatmul.f32.gmra.mxu0 %v599
    %v660 = vpop.f32.mrf.mxu0
    %v661 = vadd.f32 0.0, %v660
    %662 = vmatmul.f32.gmra.mxu0 %v600
    %v663 = vpop.f32.mrf.mxu0
    %v664 = vadd.f32 0.0, %v663
    %665 = vdwg.mxu0
    %666 = vst [vmem:[#allocation8] sm:$0xff] %v619
    %667 = vst [vmem:[#allocation8 + $0x8] sm:$0xff] %v622
    %668 = vst [vmem:[#allocation8 + $0x10] sm:$0xff] %v625
    %669 = vst [vmem:[#allocation8 + $0x18] sm:$0xff] %v628
    %670 = vst [vmem:[#allocation8 + $0x20] sm:$0xff] %v631
    %671 = vst [vmem:[#allocation8 + $0x28] sm:$0xff] %v634
    %672 = vst [vmem:[#allocation8 + $0x30] sm:$0xff] %v637
    %673 = vst [vmem:[#allocation8 + $0x38] sm:$0xff] %v640
    %674 = vst [vmem:[#allocation8 + $0x40] sm:$0xff] %v643
    %675 = vst [vmem:[#allocation8 + $0x48] sm:$0xff] %v646
    %676 = vst [vmem:[#allocation8 + $0x50] sm:$0xff] %v649
    %677 = vst [vmem:[#allocation8 + $0x58] sm:$0xff] %v652
    %678 = vst [vmem:[#allocation8 + $0x60] sm:$0xff] %v655
    %679 = vst [vmem:[#allocation8 + $0x68] sm:$0xff] %v658
    %680 = vst [vmem:[#allocation8 + $0x70] sm:$0xff] %v661
    %681 = vst [vmem:[#allocation8 + $0x78] sm:$0xff] %v664
    // Predicated region
    $region26: #{tpu_custom_call.1} parent=1 // pred_check
      _
    $region27: #{tpu_custom_call.1} parent=1 // pred_check_branch
      %683 = sbr.rel (0) target = $region29
    $region28: #{tpu_custom_call.1} parent=1 // pred_region
      %685 = vsyncadd [#allocation4], 0
      %s686 = sshll.u32 [#allocation8], 4
      %s687 = int_to_ptr.vmem [resolvable:$true] %s686
      %s688 = sshll.u32 %s3, 4
      %s689 = int_to_ptr.hbm [resolvable:$true] %s688
      %694 = dma.vmem_to_hbm [thread:$0]  %s687, 2048, %s689, [#allocation4], 128, 128, 8
    $region29: #{tpu_custom_call.1} parent=1 // pred_fallthru
      _
    // Predicated region
    $region30: #{tpu_custom_call.1} parent=1 // pred_check
      _
    $region31: #{tpu_custom_call.1} parent=1 // pred_check_branch
      %696 = sbr.rel (0) target = $region33
    $region32: #{tpu_custom_call.1} parent=1 // pred_region
      %698 = dma.done [#allocation4], 2048
    $region33: #{tpu_custom_call.1} parent=1 // pred_fallthru
      _
    %699 = vsyncpa [#allocation3], 1
    %700 = vsyncpa [#allocation6], 1
    %701 = vsyncpa [#allocation4], 1

</llo_original>
